<compile_context>
chip_gen: v6e
topology: v6e:2x2x1
jax: 0.10.0
libtpu: 0.0.40
codegen_flags: <defaults>
</compile_context>

<pallas_src>
import functools

import jax
import jax.numpy as jnp
from jax.experimental import pallas as pl
from jax.experimental.pallas import tpu as pltpu

HID = 128         # fused hidden width (policy 64 | value 64)
OUT_LANES = 128   # packed output slab lane width (== head width)


def _round_up(n, m):
    return ((n + m - 1) // m) * m


def _pick_block(batch, max_block):
    """Largest batch block that is a multiple of 8, <= max_block, and — for large
    batches that would otherwise be a single block — yields >= 2 grid steps so the
    "parallel" batch axis can be sharded across both TensorCores (v7x)."""
    b8 = _round_up(batch, 8)
    if b8 <= max_block:
        if b8 >= 512:
            return _round_up((b8 + 1) // 2, 8)
        return b8
    return max_block


def _fused_kernel(adim, cdt, x_ref, a_ref, eps_ref, w1_ref, w23_ref, c_ref, out_ref):
    f32 = jnp.float32
    blk = out_ref.shape[0]

    # constants slab (f32): rows 0/1 = fused biases [b|c], row 2 = head bias in the
    # output-slab layout (with the log-prob constant folded in), row 3 = std,
    # row 4 = -1/(2*std^2).
    c = c_ref[...]
    b1 = c[0:1, :]
    b2 = c[1:2, :]
    b3 = c[2:3, :]
    std = c[3:4, 0:adim]
    niv = c[4:5, 0:adim]

    # --- fused (policy | value) MLP: three 128-wide MXU matmuls, bf16 in / f32 acc ---
    h = jnp.maximum(
        jnp.dot(x_ref[...].astype(cdt), w1_ref[...],
                preferred_element_type=f32) + b1, 0.0)
    h = jnp.maximum(
        jnp.dot(h.astype(cdt), w23_ref[0:HID, :],
                preferred_element_type=f32) + b2, 0.0)
    head = jnp.dot(h.astype(cdt), w23_ref[HID:2 * HID, :],
                   preferred_element_type=f32) + b3
    # head lanes: [ mu | mu | -cl_sum | -cl_sum | v | 0 ... ]

    mu = head[:, 0:adim]                              # (blk, adim)
    a = a_ref[...]                                    # (blk, adim) f32
    eps = eps_ref[...]                                # (blk, adim) f32

    pi_delta = std * eps                              # = pi - mu
    err_a = a - mu
    # Normal(mu, std) log-prob quadratic terms (constant already folded into head):
    #   logp_pi = -0.5*sum(eps^2) - cl_sum ;  logp = sum((a-mu)^2 * niv) - cl_sum
    sp = -0.5 * jnp.sum(eps * eps, axis=-1, keepdims=True)        # (blk, 1)
    sa = jnp.sum(err_a * err_a * niv, axis=-1, keepdims=True)     # (blk, 1)

    delta = jnp.concatenate(
        [pi_delta,
         jnp.zeros((blk, adim), f32),
         sp, sa,
         jnp.zeros((blk, OUT_LANES - 2 * adim - 2), f32)], axis=-1)

    # one unmasked full-width store: [pi | mu | logp_pi | logp | v | 0 ...]
    out_ref[...] = head + delta


def pack_params(params, odim, adim, compute_dtype=jnp.bfloat16):
    """One-time host-side packing of the 13 torch-layout tensors into 3 kernel tensors."""
    (w1, b1, w2, b2, w3, b3, v1, c1, v2, c2, v3, c3, log_std) = params
    hp = w1.shape[1]   # policy hidden (64)
    hv = v1.shape[1]   # value hidden  (64)
    assert hp + hv == HID, "fused hidden width must be exactly 128"
    assert 2 * adim + 3 <= OUT_LANES
    f32 = jnp.float32

    # layer 1: [w1 | v1]  (odim, 128) — x is fed unpadded, Mosaic pads K internally
    w1f = jnp.zeros((odim, HID), f32).at[:, :hp].set(w1).at[:, hp:].set(v1)
    # layer 2: block-diagonal — off-diagonal blocks are exact zeros (no path leakage)
    w2f = jnp.zeros((HID, HID), f32).at[:hp, :hp].set(w2).at[hp:, hp:].set(v2)
    # head in output-slab layout: mu in [0,adim) AND duplicated in [adim,2*adim),
    # v at lane 2*adim+2 — the MXU does the lane placement for free.
    w3f = (jnp.zeros((HID, OUT_LANES), f32)
           .at[:hp, 0:adim].set(w3)
           .at[:hp, adim:2 * adim].set(w3)
           .at[hp:, 2 * adim + 2:2 * adim + 3].set(v3))

    # distribution constants (parameter-only -> precompute once)
    std = jnp.exp(log_std)                                        # (1, adim)
    niv = -1.0 / (2.0 * std * std)
    cl_sum = jnp.sum(log_std) + 0.5 * adim * jnp.log(2.0 * jnp.pi)

    b3f = (jnp.zeros((1, OUT_LANES), f32)
           .at[:, 0:adim].set(b3)
           .at[:, adim:2 * adim].set(b3)
           .at[:, 2 * adim].set(-cl_sum)
           .at[:, 2 * adim + 1].set(-cl_sum)
           .at[:, 2 * adim + 2:2 * adim + 3].set(c3))

    consts = (jnp.zeros((8, OUT_LANES), f32)
              .at[0:1, :].set(jnp.concatenate([b1, c1], axis=1))
              .at[1:2, :].set(jnp.concatenate([b2, c2], axis=1))
              .at[2:3, :].set(b3f)
              .at[3:4, 0:adim].set(std)
              .at[4:5, 0:adim].set(niv))

    w23f = jnp.concatenate([w2f, w3f], axis=0).astype(compute_dtype)   # (256, 128)
    return (w1f.astype(compute_dtype), w23f, consts)


@functools.partial(jax.jit, static_argnames=("block_b",))
def actor_critic_forward(x, a, eps, packed, block_b=1024):
    """Runs ActorCritic.forward. Returns (pi, mu, logp_pi, v, logp).

    NOTE: the original PyTorch ActorCritic.forward unpacks the policy tuple
    (pi, logp, logp_pi, mu) into names (pi, mu, logp_pi, logp), so its returned
    tuple (pi, logp, logp_pi, v, mu) actually contains
    (pi, mu_actual, logp_pi, v, logp_actual). We reproduce exactly that ordering.

    block_b: max batch rows per grid step (works for v5e/v6e/v7x; the wrapper
    auto-splits a large single block in two so v7x can use both TensorCores).
    """
    B, odim = x.shape
    adim = a.shape[1]
    w1f, w23f, consts = packed

    blk = _pick_block(B, block_b)
    b_pad = _round_up(B, blk)
    if b_pad != B:   # zero-pad batch only when the block does not divide it
        pad = ((0, b_pad - B), (0, 0))
        x, a, eps = jnp.pad(x, pad), jnp.pad(a, pad), jnp.pad(eps, pad)

    grid = (b_pad // blk,)

    def const_spec(arr):
        return pl.BlockSpec(arr.shape, lambda i: (0, 0))   # VMEM-resident across grid

    flops = 2 * b_pad * (odim * HID + HID * HID + HID * OUT_LANES)
    bytes_accessed = (4 * b_pad * (odim + 2 * adim + OUT_LANES)
                      + w1f.dtype.itemsize * w1f.size
                      + w23f.dtype.itemsize * w23f.size
                      + 4 * consts.size)

    out = pl.pallas_call(
        functools.partial(_fused_kernel, adim, w1f.dtype),
        out_shape=jax.ShapeDtypeStruct((b_pad, OUT_LANES), jnp.float32),
        grid=grid,
        in_specs=[
            pl.BlockSpec((blk, odim), lambda i: (i, 0)),
            pl.BlockSpec((blk, adim), lambda i: (i, 0)),
            pl.BlockSpec((blk, adim), lambda i: (i, 0)),
            const_spec(w1f), const_spec(w23f), const_spec(consts),
        ],
        out_specs=pl.BlockSpec((blk, OUT_LANES), lambda i: (i, 0)),
        compiler_params=pltpu.CompilerParams(dimension_semantics=("parallel",)),
        cost_estimate=pl.CostEstimate(flops=flops, transcendentals=0,
                                      bytes_accessed=bytes_accessed),
    )(x, a, eps, w1f, w23f, consts)

    out = out[:B]
    pi = out[:, 0:adim]
    mu = out[:, adim:2 * adim]
    logp_pi = out[:, 2 * adim]                 # (B,) to match torch .sum(dim=1)
    logp = out[:, 2 * adim + 1]                # (B,)
    v = out[:, 2 * adim + 2:2 * adim + 3]      # (B, 1) to match torch vf_mlp output

    # Matches PyTorch ActorCritic.forward returned tuple (with its internal name swap).
    return pi, mu, logp_pi, v, logp


def init_params(key, odim, adim, hdims=(64, 64)):
    """Deterministic synthetic parameter init (shapes match the torch module)."""
    keys = jax.random.split(key, 12)

    def lin(kw, kb, fan_in, fan_out):
        bound = 1.0 / jnp.sqrt(fan_in)
        w = jax.random.uniform(kw, (fan_in, fan_out), jnp.float32, -bound, bound)
        b = jax.random.uniform(kb, (1, fan_out), jnp.float32, -bound, bound)
        return w, b

    h0, h1 = hdims
    w1, b1 = lin(keys[0], keys[1], odim, h0)      # policy mean MLP
    w2, b2 = lin(keys[2], keys[3], h0, h1)
    w3, b3 = lin(keys[4], keys[5], h1, adim)
    v1, c1 = lin(keys[6], keys[7], odim, h0)      # value MLP
    v2, c2 = lin(keys[8], keys[9], h0, h1)
    v3, c3 = lin(keys[10], keys[11], h1, 1)
    log_std = -0.5 * jnp.ones((1, adim), jnp.float32)   # nn.Parameter init
    return (w1, b1, w2, b2, w3, b3, v1, c1, v2, c2, v3, c3, log_std)


def ref_forward(x, a, eps, params, mm_dtype=jnp.float32):
    """Pure-JAX reference (torch-layout params). mm_dtype=bfloat16 mimics the kernel's
    bf16 MXU inputs with f32 accumulation; mm_dtype=float32 is the exact-math reference."""
    (w1, b1, w2, b2, w3, b3, v1, c1, v2, c2, v3, c3, log_std) = params

    def mm(u, w):
        return jnp.dot(u.astype(mm_dtype), w.astype(mm_dtype),
                       preferred_element_type=jnp.float32)

    h = jax.nn.relu(mm(x, w1) + b1)
    h = jax.nn.relu(mm(h, w2) + b2)
    mu_r = mm(h, w3) + b3
    std = jnp.exp(log_std)
    pi_r = mu_r + std * eps
    lp = lambda val: (-((val - mu_r) ** 2) / (2 * std * std)
                      - log_std - 0.5 * jnp.log(2 * jnp.pi))
    logp_pi_r = jnp.sum(lp(pi_r), axis=-1)
    logp_r = jnp.sum(lp(a), axis=-1)
    g = jax.nn.relu(mm(x, v1) + c1)
    g = jax.nn.relu(mm(g, v2) + c2)
    v_r = mm(g, v3) + c3
    return pi_r, mu_r, logp_pi_r, v_r, logp_r


if __name__ == "__main__":
    # AntBulletEnv-v0: obs dim 28, action dim 8 (batch kept small for the demo).
    odim, adim = 28, 8

    key = jax.random.PRNGKey(0)
    k_x, k_a, k_eps, k_params = jax.random.split(key, 4)
    params = init_params(k_params, odim, adim)
    packed = pack_params(params, odim, adim)

    # TODO(synk): torch Normal.sample() RNG is not reproduced bit-exactly; standard-normal
    # noise is generated host-side and passed in as eps.

    def run_and_check(B, block_b):
        kx, ka, ke = jax.random.split(jax.random.fold_in(k_x, B), 3)
        x = jax.random.normal(kx, (B, odim), jnp.float32)
        a = jax.random.normal(ka, (B, adim), jnp.float32)
        eps = jax.random.normal(ke, (B, adim), jnp.float32)

        outs = actor_critic_forward(x, a, eps, packed, block_b=block_b)
        jax.block_until_ready(outs)

        # tight check vs a reference using the same bf16 matmul inputs / f32 accumulation
        refs_bf16 = ref_forward(x, a, eps, params, mm_dtype=jnp.bfloat16)
        for got, want in zip(outs, refs_bf16):
            assert jnp.allclose(got, want, atol=2e-3, rtol=2e-3)

        # loose semantic check vs the full-f32 reference (bf16 MXU inputs in the kernel)
        refs_f32 = ref_forward(x, a, eps, params, mm_dtype=jnp.float32)
        for got, want in zip(outs, refs_f32):
            assert jnp.allclose(got, want, atol=5e-2, rtol=1e-1)

    run_and_check(B=4, block_b=1024)     # single small block
    run_and_check(B=200, block_b=64)     # multi-block grid + batch padding path

    print("KERNEL_OK")
</pallas_src>

<mosaic_0001>
module attributes {stable_mosaic.version = 11 : i64} {
  func.func @_fused_kernel(%arg0: i32, %arg1: memref<8x28xf32, #tpu.memory_space<vmem>>, %arg2: memref<8x8xf32, #tpu.memory_space<vmem>>, %arg3: memref<8x8xf32, #tpu.memory_space<vmem>>, %arg4: memref<28x128xbf16, #tpu.memory_space<vmem>>, %arg5: memref<256x128xbf16, #tpu.memory_space<vmem>>, %arg6: memref<8x128xf32, #tpu.memory_space<vmem>>, %arg7: memref<8x128xf32, #tpu.memory_space<vmem>>) attributes {dimension_semantics = [#tpu.dimension_semantics<parallel>], iteration_bounds = array<i64: 1>, scalar_prefetch = 0 : i64, scratch_operands = 0 : i64, tpu.core_type = #tpu.core_type<tc>, window_params = [{transform_indices = @transform_0, window_bounds = array<i64: 8, 28>}, {transform_indices = @transform_1, window_bounds = array<i64: 8, 8>}, {transform_indices = @transform_2, window_bounds = array<i64: 8, 8>}, {pipeline_mode = #tpu.pipeline_mode<synchronous>, transform_indices = @transform_3, window_bounds = array<i64: 28, 128>}, {pipeline_mode = #tpu.pipeline_mode<synchronous>, transform_indices = @transform_4, window_bounds = array<i64: 256, 128>}, {pipeline_mode = #tpu.pipeline_mode<synchronous>, transform_indices = @transform_5, window_bounds = array<i64: 8, 128>}, {transform_indices = @transform_6, window_bounds = array<i64: 8, 128>}]} {
    %c0 = arith.constant 0 : index
    %c0_0 = arith.constant 0 : index
    %0 = vector.load %arg6[%c0, %c0_0] : memref<8x128xf32, #tpu.memory_space<vmem>>, vector<8x128xf32>
    %1 = vector.extract_strided_slice %0 {offsets = [0, 0], sizes = [1, 128], strides = [1, 1]} : vector<8x128xf32> to vector<1x128xf32>
    %2 = vector.extract_strided_slice %0 {offsets = [1, 0], sizes = [1, 128], strides = [1, 1]} : vector<8x128xf32> to vector<1x128xf32>
    %3 = vector.extract_strided_slice %0 {offsets = [2, 0], sizes = [1, 128], strides = [1, 1]} : vector<8x128xf32> to vector<1x128xf32>
    %4 = vector.extract_strided_slice %0 {offsets = [3, 0], sizes = [1, 8], strides = [1, 1]} : vector<8x128xf32> to vector<1x8xf32>
    %5 = vector.extract_strided_slice %0 {offsets = [4, 0], sizes = [1, 8], strides = [1, 1]} : vector<8x128xf32> to vector<1x8xf32>
    %c0_1 = arith.constant 0 : index
    %c0_2 = arith.constant 0 : index
    %6 = vector.load %arg1[%c0_1, %c0_2] : memref<8x28xf32, #tpu.memory_space<vmem>>, vector<8x28xf32>
    %7 = arith.truncf %6 : vector<8x28xf32> to vector<8x28xbf16>
    %c0_3 = arith.constant 0 : index
    %c0_4 = arith.constant 0 : index
    %8 = vector.load %arg4[%c0_3, %c0_4] : memref<28x128xbf16, #tpu.memory_space<vmem>>, vector<28x128xbf16>
    %cst = arith.constant dense<0.000000e+00> : vector<8x128xf32>
    %9 = tpu.matmul %7, %8, %cst {dimension_numbers = #tpu.dot_dimension_numbers<[1], [0], [0], [1], [0, 0, 1, 1], [], []>} : vector<8x28xbf16>, vector<28x128xbf16>, vector<8x128xf32> -> vector<8x128xf32>
    %10 = vector.broadcast %1 : vector<1x128xf32> to vector<8x128xf32>
    %11 = arith.addf %9, %10 : vector<8x128xf32>
    %cst_5 = arith.constant 0.000000e+00 : f32
    %12 = vector.broadcast %cst_5 : f32 to vector<8x128xf32>
    %13 = arith.maximumf %11, %12 : vector<8x128xf32>
    %14 = arith.truncf %13 : vector<8x128xf32> to vector<8x128xbf16>
    %c0_6 = arith.constant 0 : index
    %c0_7 = arith.constant 0 : index
    %15 = vector.load %arg5[%c0_6, %c0_7] : memref<256x128xbf16, #tpu.memory_space<vmem>>, vector<128x128xbf16>
    %cst_8 = arith.constant dense<0.000000e+00> : vector<8x128xf32>
    %16 = tpu.matmul %14, %15, %cst_8 {dimension_numbers = #tpu.dot_dimension_numbers<[1], [0], [0], [1], [0, 0, 1, 1], [], []>} : vector<8x128xbf16>, vector<128x128xbf16>, vector<8x128xf32> -> vector<8x128xf32>
    %17 = vector.broadcast %2 : vector<1x128xf32> to vector<8x128xf32>
    %18 = arith.addf %16, %17 : vector<8x128xf32>
    %cst_9 = arith.constant 0.000000e+00 : f32
    %19 = vector.broadcast %cst_9 : f32 to vector<8x128xf32>
    %20 = arith.maximumf %18, %19 : vector<8x128xf32>
    %21 = arith.truncf %20 : vector<8x128xf32> to vector<8x128xbf16>
    %c128 = arith.constant 128 : index
    %c0_10 = arith.constant 0 : index
    %22 = vector.load %arg5[%c128, %c0_10] : memref<256x128xbf16, #tpu.memory_space<vmem>>, vector<128x128xbf16>
    %cst_11 = arith.constant dense<0.000000e+00> : vector<8x128xf32>
    %23 = tpu.matmul %21, %22, %cst_11 {dimension_numbers = #tpu.dot_dimension_numbers<[1], [0], [0], [1], [0, 0, 1, 1], [], []>} : vector<8x128xbf16>, vector<128x128xbf16>, vector<8x128xf32> -> vector<8x128xf32>
    %24 = vector.broadcast %3 : vector<1x128xf32> to vector<8x128xf32>
    %25 = arith.addf %23, %24 : vector<8x128xf32>
    %26 = vector.extract_strided_slice %25 {offsets = [0, 0], sizes = [8, 8], strides = [1, 1]} : vector<8x128xf32> to vector<8x8xf32>
    %c0_12 = arith.constant 0 : index
    %c0_13 = arith.constant 0 : index
    %27 = vector.load %arg2[%c0_12, %c0_13] : memref<8x8xf32, #tpu.memory_space<vmem>>, vector<8x8xf32>
    %c0_14 = arith.constant 0 : index
    %c0_15 = arith.constant 0 : index
    %28 = vector.load %arg3[%c0_14, %c0_15] : memref<8x8xf32, #tpu.memory_space<vmem>>, vector<8x8xf32>
    %29 = vector.broadcast %4 : vector<1x8xf32> to vector<8x8xf32>
    %30 = arith.mulf %29, %28 : vector<8x8xf32>
    %31 = arith.subf %27, %26 : vector<8x8xf32>
    %32 = arith.mulf %28, %28 : vector<8x8xf32>
    %cst_16 = arith.constant dense<0.000000e+00> : vector<8xf32>
    %33 = vector.multi_reduction <add>, %32, %cst_16 [1] : vector<8x8xf32> to vector<8xf32>
    %34 = vector.shape_cast %33 : vector<8xf32> to vector<8x1xf32>
    %cst_17 = arith.constant -5.000000e-01 : f32
    %35 = vector.broadcast %cst_17 : f32 to vector<8x1xf32>
    %36 = arith.mulf %35, %34 : vector<8x1xf32>
    %37 = arith.mulf %31, %31 : vector<8x8xf32>
    %38 = vector.broadcast %5 : vector<1x8xf32> to vector<8x8xf32>
    %39 = arith.mulf %37, %38 : vector<8x8xf32>
    %cst_18 = arith.constant dense<0.000000e+00> : vector<8xf32>
    %40 = vector.multi_reduction <add>, %39, %cst_18 [1] : vector<8x8xf32> to vector<8xf32>
    %41 = vector.shape_cast %40 : vector<8xf32> to vector<8x1xf32>
    %cst_19 = arith.constant 0.000000e+00 : f32
    %42 = vector.broadcast %cst_19 : f32 to vector<8x8xf32>
    %cst_20 = arith.constant 0.000000e+00 : f32
    %43 = vector.broadcast %cst_20 : f32 to vector<8x110xf32>
    %44 = tpu.concatenate %30, %42, %36, %41, %43 in 1 : vector<8x8xf32>, vector<8x8xf32>, vector<8x1xf32>, vector<8x1xf32>, vector<8x110xf32> -> vector<8x128xf32>
    %45 = arith.addf %25, %44 : vector<8x128xf32>
    %c0_21 = arith.constant 0 : index
    %c0_22 = arith.constant 0 : index
    %46 = vector.load %arg7[%c0_21, %c0_22] : memref<8x128xf32, #tpu.memory_space<vmem>>, vector<8x128xf32>
    tpu.vector_store %arg7[%c0_21, %c0_22], %45 {strides = array<i32>} : memref<8x128xf32, #tpu.memory_space<vmem>>, vector<8x128xf32>,
    return
  }
  func.func @transform_0(%arg0: i32) -> (i32, i32) {
    %c0_i32 = arith.constant 0 : i32
    %c0_i32_0 = arith.constant 0 : i32
    return %arg0, %c0_i32 : i32, i32
  }
  func.func @transform_1(%arg0: i32) -> (i32, i32) {
    %c0_i32 = arith.constant 0 : i32
    %c0_i32_0 = arith.constant 0 : i32
    return %arg0, %c0_i32 : i32, i32
  }
  func.func @transform_2(%arg0: i32) -> (i32, i32) {
    %c0_i32 = arith.constant 0 : i32
    %c0_i32_0 = arith.constant 0 : i32
    return %arg0, %c0_i32 : i32, i32
  }
  func.func @transform_3(%arg0: i32) -> (i32, i32) {
    %c0_i32 = arith.constant 0 : i32
    %c0_i32_0 = arith.constant 0 : i32
    %c0_i32_1 = arith.constant 0 : i32
    return %c0_i32, %c0_i32_0 : i32, i32
  }
  func.func @transform_4(%arg0: i32) -> (i32, i32) {
    %c0_i32 = arith.constant 0 : i32
    %c0_i32_0 = arith.constant 0 : i32
    %c0_i32_1 = arith.constant 0 : i32
    return %c0_i32, %c0_i32_0 : i32, i32
  }
  func.func @transform_5(%arg0: i32) -> (i32, i32) {
    %c0_i32 = arith.constant 0 : i32
    %c0_i32_0 = arith.constant 0 : i32
    %c0_i32_1 = arith.constant 0 : i32
    return %c0_i32, %c0_i32_0 : i32, i32
  }
  func.func @transform_6(%arg0: i32) -> (i32, i32) {
    %c0_i32 = arith.constant 0 : i32
    %c0_i32_0 = arith.constant 0 : i32
    return %arg0, %c0_i32 : i32, i32
  }
}

</mosaic_0001>

<llo_original>
// kernel: actor_critic_forward.1
$region0: #{actor_critic_forward.1}
  #allocation0 [shape = 'u32[]', space=smem, size = 0x4, offset = 0x4, fixed_abs, tag = 'smem constant byte address 0x4 - core index']
  #allocation1 [shape = 'u32[144,128]{1,0:T(1,128)}', space=vmem, size = 0x12000, scoped, tag = 'internal scratch']
  %s0 = inlined_call_operand.vmem [shape: f32[8,28], index: 0, kind: input, shape index: {}]
  %s1 = inlined_call_operand.vmem [shape: f32[8,8], index: 1, kind: input, shape index: {}]
  %s2 = inlined_call_operand.vmem [shape: f32[8,8], index: 2, kind: input, shape index: {}]
  %s3 = inlined_call_operand.vmem [shape: bf16[28,128], index: 3, kind: input, shape index: {}]
  %s4 = inlined_call_operand.hbm [shape: bf16[256,128], index: 4, kind: input, shape index: {}]
  %s5 = inlined_call_operand.vmem [shape: f32[8,128], index: 5, kind: input, shape index: {}]
  %s6 = inlined_call_operand.vmem [shape: f32[8,128], index: 6, kind: output, shape index: {}]
  %s7 = sld [smem:[#allocation0]]
  $region38: #{actor_critic_forward.1} parent=0
    _
  %s9 = ssub.s32 1, %s7
  %s10 = scalar_select 0, %s9, %s7
  $region1: #{actor_critic_forward.1} parent=0
    #allocation2 [shape = 'u8[65536]{0}', space=vmem, size = 0x10000, scoped, tag = 'input window, operand 4, single buffered']
    #allocation3 [shape = 's32[1]{0}', space=sflag, size = 0x4, scoped, tag = 'scoped memory for actor_critic_forward.1']
    %11 = vsyncpa [#allocation3], 0
    // Predicated region
    $region2: #{actor_critic_forward.1} parent=1 // pred_check
      _
    $region3: #{actor_critic_forward.1} parent=1 // pred_check_branch
      %13 = sbr.rel (0) target = $region5
    $region4: #{actor_critic_forward.1} parent=1 // pred_region
      _
    $region5: #{actor_critic_forward.1} parent=1 // pred_fallthru
      _
    // Predicated region
    $region6: #{actor_critic_forward.1} parent=1 // pred_check
      _
    $region7: #{actor_critic_forward.1} parent=1 // pred_check_branch
      %15 = sbr.rel (0) target = $region9
    $region8: #{actor_critic_forward.1} parent=1 // pred_region
      _
    $region9: #{actor_critic_forward.1} parent=1 // pred_fallthru
      _
    // Predicated region
    $region10: #{actor_critic_forward.1} parent=1 // pred_check
      _
    $region11: #{actor_critic_forward.1} parent=1 // pred_check_branch
      %17 = sbr.rel (0) target = $region13
    $region12: #{actor_critic_forward.1} parent=1 // pred_region
      _
    $region13: #{actor_critic_forward.1} parent=1 // pred_fallthru
      _
    // Predicated region
    $region14: #{actor_critic_forward.1} parent=1 // pred_check
      _
    $region15: #{actor_critic_forward.1} parent=1 // pred_check_branch
      %19 = sbr.rel (0) target = $region17
    $region16: #{actor_critic_forward.1} parent=1 // pred_region
      _
    $region17: #{actor_critic_forward.1} parent=1 // pred_fallthru
      _
    // Predicated region
    $region18: #{actor_critic_forward.1} parent=1 // pred_check
      _
    $region19: #{actor_critic_forward.1} parent=1 // pred_check_branch
      %21 = sbr.rel (0) target = $region21
    $region20: #{actor_critic_forward.1} parent=1 // pred_region
      %s23 = ssub.s32 2048, 2048
      %24 = vsyncadd [#allocation3], %s23
      %s25 = sshll.u32 [#allocation2], 4
      %s26 = int_to_ptr.vmem [resolvable:$true] %s25
      %31 = dma.hbm_to_vmem [thread:$0]  %s4, 2048, %s26, [#allocation3], 64, 64, 4
    $region21: #{actor_critic_forward.1} parent=1 // pred_fallthru
      _
    // Predicated region
    $region22: #{actor_critic_forward.1} parent=1 // pred_check
      _
    $region23: #{actor_critic_forward.1} parent=1 // pred_check_branch
      %33 = sbr.rel (0) target = $region25
    $region24: #{actor_critic_forward.1} parent=1 // pred_region
      _
    $region25: #{actor_critic_forward.1} parent=1 // pred_fallthru
      _
    // Predicated region
    $region26: #{actor_critic_forward.1} parent=1 // pred_check
      _
    $region27: #{actor_critic_forward.1} parent=1 // pred_check_branch
      %35 = sbr.rel (0) target = $region29
    $region28: #{actor_critic_forward.1} parent=1 // pred_region
      %36 = dma.done [#allocation3], 2048
    $region29: #{actor_critic_forward.1} parent=1 // pred_fallthru
      _
    %v38 = vld [vmem:[%s5] sm:$0xff]
    %v39 = vld [vmem:[%s0] sm:$0xff]
    %v40 = vpack.c.bf16 %v39, %v39
    %v41 = vld [vmem:[%s3] sm:$0xf]
    %v42 = vld [vmem:[%s3 + $0x4] sm:$0xf]
    %v43 = vld [vmem:[%s3 + $0x8] sm:$0xf]
    %v44 = vld [vmem:[%s3 + $0xc] sm:$0x3]
    %v45 = vlaneseq
    %v46 = vshrl.u32 %v45, 7
    %v47 = vsub.s32 0, %v46
    %v48 = vrot.slane %v38, %v47
    %v53 = vunpack.c.l.b16 %v41
    %v54 = vunpack.c.l.b16 %v42
    %v55 = vunpack.c.l.b16 %v43
    %v56 = vunpack.c.l.b16 %v44
    %v57 = vpack.c.b16 %v54, %v53
    %v58 = vpack.c.b16 %v56, %v55
    %vm60 = vcmask 228352
    %v62 = vsel %vm60, %v40, 0
    %vm64 = vcmask 1045504
    %v66 = vsel %vm64, %v58, 0
    %68 = vmatprep.subr.bf16.mxu0 0
    %69 = vmatpush1.bf16.msra.mxu0 0
    %70 = vmatprep.subr.bf16.mxu0 0
    %71 = vmatpush1.bf16.msra.mxu0 0
    %72 = vmatprep.subr.bf16.mxu0 0
    %73 = vmatpush1.bf16.msra.mxu0 0
    %74 = vmatprep.subr.bf16.mxu0 0
    %75 = vmatpush1.bf16.msra.mxu0 0
    %76 = vmatprep.subr.bf16.mxu0 0
    %77 = vmatpush1.bf16.msra.mxu0 0
    %78 = vmatprep.subr.bf16.mxu0 0
    %79 = vmatpush1.bf16.msra.mxu0 0
    %80 = vmatprep.subr.bf16.mxu0 0
    %81 = vmatpush1.bf16.msra.mxu0 %v66
    %82 = vmatprep.subr.bf16.mxu0 0
    %83 = vmatpush1.bf16.msra.mxu0 %v57
    %84 = vmatprep.subr.bf16.mxu0 0
    %85 = vmatpush2.bf16.msra.mxu0 0
    %86 = vmatprep.subr.bf16.mxu0 0
    %87 = vmatpush2.bf16.msra.mxu0 0
    %88 = vmatprep.subr.bf16.mxu0 0
    %89 = vmatpush2.bf16.msra.mxu0 0
    %90 = vmatprep.subr.bf16.mxu0 0
    %91 = vmatpush2.bf16.msra.mxu0 0
    %92 = vmatprep.subr.bf16.mxu0 0
    %93 = vmatpush2.bf16.msra.mxu0 0
    %94 = vmatprep.subr.bf16.mxu0 0
    %95 = vmatpush2.bf16.msra.mxu0 0
    %96 = vmatprep.subr.bf16.mxu0 0
    %97 = vmatpush2.bf16.msra.mxu0 0
    %98 = vmatprep.subr.bf16.mxu0 0
    %99 = vmatpush2.bf16.msra.mxu0 0
    %100 = vmatprep.mubr.bf16.mxu0 0
    %101 = vmatmul.mubr.bf16.gmra.mxu0 %v62
    %v102 = vpop.f32.mrf.mxu0
    %v103 = vadd.f32 %v48, %v102
    %v104 = vpop.f32.mrf.mxu0
    %v105 = vpop.f32.mrf.mxu0
    %v106 = vpop.f32.mrf.mxu0
    %107 = vdwg.mxu0
    %v108 = vmax.f32 %v103, 0.0
    %v109 = vpack.c.bf16 %v108, %v108
    %v110 = vld [vmem:[#allocation2] sm:$0xf]
    %v111 = vld [vmem:[#allocation2 + $0x4] sm:$0xf]
    %v112 = vld [vmem:[#allocation2 + $0x8] sm:$0xf]
    %v113 = vld [vmem:[#allocation2 + $0xc] sm:$0xf]
    %v114 = vld [vmem:[#allocation2 + $0x10] sm:$0xf]
    %v115 = vld [vmem:[#allocation2 + $0x14] sm:$0xf]
    %v116 = vld [vmem:[#allocation2 + $0x18] sm:$0xf]
    %v117 = vld [vmem:[#allocation2 + $0x1c] sm:$0xf]
    %v118 = vld [vmem:[#allocation2 + $0x20] sm:$0xf]
    %v119 = vld [vmem:[#allocation2 + $0x24] sm:$0xf]
    %v120 = vld [vmem:[#allocation2 + $0x28] sm:$0xf]
    %v121 = vld [vmem:[#allocation2 + $0x2c] sm:$0xf]
    %v122 = vld [vmem:[#allocation2 + $0x30] sm:$0xf]
    %v123 = vld [vmem:[#allocation2 + $0x34] sm:$0xf]
    %v124 = vld [vmem:[#allocation2 + $0x38] sm:$0xf]
    %v125 = vld [vmem:[#allocation2 + $0x3c] sm:$0xf]
    %v126 = vlaneseq
    %v127 = vshrl.u32 %v126, 7
    %v128 = vsub.s32 1, %v127
    %v129 = vrot.slane %v38, %v128
    %v146 = vunpack.c.l.b16 %v110
    %v147 = vunpack.c.l.b16 %v111
    %v148 = vunpack.c.l.b16 %v112
    %v149 = vunpack.c.l.b16 %v113
    %v150 = vunpack.c.l.b16 %v114
    %v151 = vunpack.c.l.b16 %v115
    %v152 = vunpack.c.l.b16 %v116
    %v153 = vunpack.c.l.b16 %v117
    %v154 = vunpack.c.l.b16 %v118
    %v155 = vunpack.c.l.b16 %v119
    %v156 = vunpack.c.l.b16 %v120
    %v157 = vunpack.c.l.b16 %v121
    %v158 = vunpack.c.l.b16 %v122
    %v159 = vunpack.c.l.b16 %v123
    %v160 = vunpack.c.l.b16 %v124
    %v161 = vunpack.c.l.b16 %v125
    %v162 = vpack.c.b16 %v147, %v146
    %v163 = vpack.c.b16 %v149, %v148
    %v164 = vpack.c.b16 %v151, %v150
    %v165 = vpack.c.b16 %v153, %v152
    %v166 = vpack.c.b16 %v155, %v154
    %v167 = vpack.c.b16 %v157, %v156
    %v168 = vpack.c.b16 %v159, %v158
    %v169 = vpack.c.b16 %v161, %v160
    %178 = vmatprep.subr.bf16.mxu0 0
    %179 = vmatpush1.bf16.msra.mxu0 %v169
    %180 = vmatprep.subr.bf16.mxu0 0
    %181 = vmatpush1.bf16.msra.mxu0 %v168
    %182 = vmatprep.subr.bf16.mxu0 0
    %183 = vmatpush1.bf16.msra.mxu0 %v167
    %184 = vmatprep.subr.bf16.mxu0 0
    %185 = vmatpush1.bf16.msra.mxu0 %v166
    %186 = vmatprep.subr.bf16.mxu0 0
    %187 = vmatpush1.bf16.msra.mxu0 %v165
    %188 = vmatprep.subr.bf16.mxu0 0
    %189 = vmatpush1.bf16.msra.mxu0 %v164
    %190 = vmatprep.subr.bf16.mxu0 0
    %191 = vmatpush1.bf16.msra.mxu0 %v163
    %192 = vmatprep.subr.bf16.mxu0 0
    %193 = vmatpush1.bf16.msra.mxu0 %v162
    %194 = vmatprep.subr.bf16.mxu0 0
    %195 = vmatpush2.bf16.msra.mxu0 0
    %196 = vmatprep.subr.bf16.mxu0 0
    %197 = vmatpush2.bf16.msra.mxu0 0
    %198 = vmatprep.subr.bf16.mxu0 0
    %199 = vmatpush2.bf16.msra.mxu0 0
    %200 = vmatprep.subr.bf16.mxu0 0
    %201 = vmatpush2.bf16.msra.mxu0 0
    %202 = vmatprep.subr.bf16.mxu0 0
    %203 = vmatpush2.bf16.msra.mxu0 0
    %204 = vmatprep.subr.bf16.mxu0 0
    %205 = vmatpush2.bf16.msra.mxu0 0
    %206 = vmatprep.subr.bf16.mxu0 0
    %207 = vmatpush2.bf16.msra.mxu0 0
    %208 = vmatprep.subr.bf16.mxu0 0
    %209 = vmatpush2.bf16.msra.mxu0 0
    %210 = vmatprep.mubr.bf16.mxu0 0
    %211 = vmatmul.mubr.bf16.gmra.mxu0 %v109
    %v212 = vpop.f32.mrf.mxu0
    %v213 = vadd.f32 %v129, %v212
    %v214 = vpop.f32.mrf.mxu0
    %v215 = vpop.f32.mrf.mxu0
    %v216 = vpop.f32.mrf.mxu0
    %217 = vdwg.mxu0
    %v218 = vmax.f32 %v213, 0.0
    %v219 = vpack.c.bf16 %v218, %v218
    %v220 = vld [vmem:[#allocation2 + $0x40] sm:$0xf]
    %v221 = vld [vmem:[#allocation2 + $0x44] sm:$0xf]
    %v222 = vld [vmem:[#allocation2 + $0x48] sm:$0xf]
    %v223 = vld [vmem:[#allocation2 + $0x4c] sm:$0xf]
    %v224 = vld [vmem:[#allocation2 + $0x50] sm:$0xf]
    %v225 = vld [vmem:[#allocation2 + $0x54] sm:$0xf]
    %v226 = vld [vmem:[#allocation2 + $0x58] sm:$0xf]
    %v227 = vld [vmem:[#allocation2 + $0x5c] sm:$0xf]
    %v228 = vld [vmem:[#allocation2 + $0x60] sm:$0xf]
    %v229 = vld [vmem:[#allocation2 + $0x64] sm:$0xf]
    %v230 = vld [vmem:[#allocation2 + $0x68] sm:$0xf]
    %v231 = vld [vmem:[#allocation2 + $0x6c] sm:$0xf]
    %v232 = vld [vmem:[#allocation2 + $0x70] sm:$0xf]
    %v233 = vld [vmem:[#allocation2 + $0x74] sm:$0xf]
    %v234 = vld [vmem:[#allocation2 + $0x78] sm:$0xf]
    %v235 = vld [vmem:[#allocation2 + $0x7c] sm:$0xf]
    %v236 = vlaneseq
    %v237 = vshrl.u32 %v236, 7
    %v238 = vsub.s32 2, %v237
    %v239 = vrot.slane %v38, %v238
    %v256 = vunpack.c.l.b16 %v220
    %v257 = vunpack.c.l.b16 %v221
    %v258 = vunpack.c.l.b16 %v222
    %v259 = vunpack.c.l.b16 %v223
    %v260 = vunpack.c.l.b16 %v224
    %v261 = vunpack.c.l.b16 %v225
    %v262 = vunpack.c.l.b16 %v226
    %v263 = vunpack.c.l.b16 %v227
    %v264 = vunpack.c.l.b16 %v228
    %v265 = vunpack.c.l.b16 %v229
    %v266 = vunpack.c.l.b16 %v230
    %v267 = vunpack.c.l.b16 %v231
    %v268 = vunpack.c.l.b16 %v232
    %v269 = vunpack.c.l.b16 %v233
    %v270 = vunpack.c.l.b16 %v234
    %v271 = vunpack.c.l.b16 %v235
    %v272 = vpack.c.b16 %v257, %v256
    %v273 = vpack.c.b16 %v259, %v258
    %v274 = vpack.c.b16 %v261, %v260
    %v275 = vpack.c.b16 %v263, %v262
    %v276 = vpack.c.b16 %v265, %v264
    %v277 = vpack.c.b16 %v267, %v266
    %v278 = vpack.c.b16 %v269, %v268
    %v279 = vpack.c.b16 %v271, %v270
    %288 = vmatprep.subr.bf16.mxu0 0
    %289 = vmatpush1.bf16.msra.mxu0 %v279
    %290 = vmatprep.subr.bf16.mxu0 0
    %291 = vmatpush1.bf16.msra.mxu0 %v278
    %292 = vmatprep.subr.bf16.mxu0 0
    %293 = vmatpush1.bf16.msra.mxu0 %v277
    %294 = vmatprep.subr.bf16.mxu0 0
    %295 = vmatpush1.bf16.msra.mxu0 %v276
    %296 = vmatprep.subr.bf16.mxu0 0
    %297 = vmatpush1.bf16.msra.mxu0 %v275
    %298 = vmatprep.subr.bf16.mxu0 0
    %299 = vmatpush1.bf16.msra.mxu0 %v274
    %300 = vmatprep.subr.bf16.mxu0 0
    %301 = vmatpush1.bf16.msra.mxu0 %v273
    %302 = vmatprep.subr.bf16.mxu0 0
    %303 = vmatpush1.bf16.msra.mxu0 %v272
    %304 = vmatprep.subr.bf16.mxu0 0
    %305 = vmatpush2.bf16.msra.mxu0 0
    %306 = vmatprep.subr.bf16.mxu0 0
    %307 = vmatpush2.bf16.msra.mxu0 0
    %308 = vmatprep.subr.bf16.mxu0 0
    %309 = vmatpush2.bf16.msra.mxu0 0
    %310 = vmatprep.subr.bf16.mxu0 0
    %311 = vmatpush2.bf16.msra.mxu0 0
    %312 = vmatprep.subr.bf16.mxu0 0
    %313 = vmatpush2.bf16.msra.mxu0 0
    %314 = vmatprep.subr.bf16.mxu0 0
    %315 = vmatpush2.bf16.msra.mxu0 0
    %316 = vmatprep.subr.bf16.mxu0 0
    %317 = vmatpush2.bf16.msra.mxu0 0
    %318 = vmatprep.subr.bf16.mxu0 0
    %319 = vmatpush2.bf16.msra.mxu0 0
    %320 = vmatprep.mubr.bf16.mxu0 0
    %321 = vmatmul.mubr.bf16.gmra.mxu0 %v219
    %v322 = vpop.f32.mrf.mxu0
    %v323 = vadd.f32 %v239, %v322
    %v324 = vpop.f32.mrf.mxu0
    %v325 = vpop.f32.mrf.mxu0
    %v326 = vpop.f32.mrf.mxu0
    %327 = vdwg.mxu0
    %v328 = vld [vmem:[%s1] sm:$0xff]
    %v329 = vld [vmem:[%s2] sm:$0xff]
    %v330 = vlaneseq
    %v331 = vshrl.u32 %v330, 7
    %v332 = vsub.s32 3, %v331
    %v333 = vrot.slane %v38, %v332
    %v334 = vmul.f32 %v333, %v329
    %v335 = vsub.f32 %v328, %v323
    %v336 = vmul.f32 %v329, %v329
    %vm337 = vcmask 64512
    %v338 = vsel %vm337, %v336, 0.0
    %339 = vadd.xlane.f32.xlu0 %v338
    %v340 = vpop.xlane.xlu0 %339
    %v341 = vmul.f32 %v340, -0.5
    %v342 = vmul.f32 %v335, %v335
    %v343 = vlaneseq
    %v344 = vshrl.u32 %v343, 7
    %v345 = vsub.s32 4, %v344
    %v346 = vrot.slane %v38, %v345
    %v347 = vmul.f32 %v342, %v346
    %v348 = vsel %vm337, %v347, 0.0
    %349 = vadd.xlane.f32.xlu0 %v348
    %v350 = vpop.xlane.xlu0 %349
    %v351 = vsel %vm337, %v334, 0.0
    %vm352 = vcmask 130048
    %v353 = vsel %vm352, %v351, %v341
    %vm354 = vcmask 138240
    %v355 = vsel %vm354, %v353, %v350
    %vm356 = vcmask 146432
    %v357 = vsel %vm356, %v355, 0.0
    %v358 = vadd.f32 %v323, %v357
    %359 = vst [vmem:[%s6] sm:$0xff] %v358
    // Predicated region
    $region30: #{actor_critic_forward.1} parent=1 // pred_check
      _
    $region31: #{actor_critic_forward.1} parent=1 // pred_check_branch
      %361 = sbr.rel (0) target = $region33
    $region32: #{actor_critic_forward.1} parent=1 // pred_region
      _
    $region33: #{actor_critic_forward.1} parent=1 // pred_fallthru
      _
    // Predicated region
    $region34: #{actor_critic_forward.1} parent=1 // pred_check
      _
    $region35: #{actor_critic_forward.1} parent=1 // pred_check_branch
      %363 = sbr.rel (0) target = $region37
    $region36: #{actor_critic_forward.1} parent=1 // pred_region
      _
    $region37: #{actor_critic_forward.1} parent=1 // pred_fallthru
      _
    %364 = vsyncpa [#allocation3], 1

</llo_original>
